<compile_context>
chip_gen: v6e
topology: v6e:2x2x1
jax: 0.10.0
libtpu: 0.0.40
codegen_flags: <defaults>
</compile_context>

<pallas_src>
import functools

import numpy as np
import jax
import jax.numpy as jnp
from jax.experimental import pallas as pl
from jax.experimental.pallas import tpu as pltpu

# ---------------- problem sizes (small, consistent with the module) ----------------
B = 2            # graphs in batch
NNODES = 4       # nodes per graph  (h_v.size(1))
IN_DIM = 8       # node hidden size (args['in'])
OUT_DIM = 16     # message size     (args['out'])
EDGE_FEAT = 16   # edge feature size (params['edge_feat'])
H1, H2, H3 = 128, 256, 128   # NNet hidden layers (hlayers default)
MAX_TILE_N = 1024            # cap on rows per grid step


def _round_up(x, m):
    return ((x + m - 1) // m) * m


def _pick_tile(n_rows, max_tile=MAX_TILE_N):
    """Rows per grid step: multiple of 8, at least 2 grid steps when possible (v7x
    megacore), capped so large edge counts amortize per-step overhead without VMEM blowup."""
    n8 = _round_up(max(n_rows, 1), 8)
    if n8 <= 8:
        return 8
    half = _round_up(-(-n8 // 2), 8)        # ceil(n8/2) rounded up to a multiple of 8
    return min(max_tile, half)


def _bf16_elementwise_ok():
    """bf16 VPU path exists on v6e/v7x; fall back to f32 elementwise elsewhere (v5e, v4)."""
    try:
        kind = jax.devices()[0].device_kind.lower()
    except Exception:
        return False
    return ("v6" in kind) or ("v7" in kind) or ("7x" in kind)


# ---------------- Pallas kernel: fused edge-MLP + per-row matvec ----------------
def mpnn_message_kernel(e_ref, hwr_ref,
                        w1_ref, b1_ref, w2_ref, b2_ref,
                        w3_ref, b3_ref, w4_ref, b4_ref,
                        t_ref, s_ref, out_ref, *, act_dt):
    bf16 = jnp.bfloat16

    def layer(x, w_ref, b_ref, relu=True):
        # bf16 MXU operands; MXU accumulates internally in f32; result lands in act_dt
        # (bf16 on v6e/v7x -> bias/ReLU on the bf16 VPU path with no cast passes,
        #  f32 on v5e which has no bf16 VALU).
        y = jnp.dot(x.astype(bf16), w_ref[...], preferred_element_type=act_dt)
        y = y + b_ref[...]
        if relu:
            y = jnp.maximum(y, 0.0)
        return y

    h = layer(e_ref[...], w1_ref, b1_ref)
    h = layer(h, w2_ref, b2_ref)
    h = layer(h, w3_ref, b3_ref)
    eo = layer(h, w4_ref, b4_ref, relu=False)               # (tile_n, OUT*IN)

    # hwt[i, o*IN + k] = h_w_rows[i, k]: replicate across the OUT groups using the exact
    # 0/1 selector T in bf16 (single MXU pass; values are copied exactly).
    hwt = jnp.dot(hwr_ref[...].astype(bf16), t_ref[...], preferred_element_type=act_dt)
    prod = eo * hwt                                          # (tile_n, OUT*IN)

    # Group-sum over each block of IN lanes == bmm(edge_output, h_w_rows[:, :, None]).
    # S is exact 0/1 in bf16; accumulate in f32.
    out_ref[...] = jnp.dot(prod.astype(bf16), s_ref[...],
                           preferred_element_type=jnp.float32)


def mpnn_message(h_v, h_w, e_vw, params, max_tile=MAX_TILE_N):
    """MessageFunction('mpnn').forward(h_v, h_w, e_vw)."""
    (w1, b1), (w2, b2), (w3, b3), (w4, b4) = params

    # torch glue: h_w[..., None].expand(N_hw, IN, NNODES).contiguous().view(-1, IN)
    # (replicates individual h_w scalars NNODES times within each row, exactly as the
    #  original module does).
    hwr = jnp.broadcast_to(h_w[..., None],
                           (h_w.shape[0], h_w.shape[1], h_v.shape[1]))
    hwr = hwr.reshape(-1, IN_DIM)

    n_rows = e_vw.shape[0]
    assert hwr.shape[0] == n_rows

    tile_n = _pick_tile(n_rows, max_tile)
    grid = (pl.cdiv(n_rows, tile_n),)

    act_dt = jnp.bfloat16 if _bf16_elementwise_ok() else jnp.float32

    # weights as bf16 MXU operands (cast once); biases in the elementwise dtype
    w1b, w2b, w3b, w4b = (w.astype(jnp.bfloat16) for w in (w1, w2, w3, w4))
    b1a, b2a, b3a, b4a = (b.astype(act_dt) for b in (b1, b2, b3, b4))

    # exact 0/1 selector matrices (bf16 is lossless for 0/1)
    t_mat = jnp.tile(jnp.eye(IN_DIM, dtype=jnp.bfloat16), (1, OUT_DIM))        # (IN, OUT*IN)
    s_mat = jnp.repeat(jnp.eye(OUT_DIM, dtype=jnp.bfloat16), IN_DIM, axis=0)   # (OUT*IN, OUT)

    row_spec = lambda shape: pl.BlockSpec(shape, lambda i: (i, 0))
    bcast_spec = lambda shape: pl.BlockSpec(shape, lambda i: (0, 0))

    cost = pl.CostEstimate(
        flops=2 * n_rows * (EDGE_FEAT * H1 + H1 * H2 + H2 * H3
                            + H3 * OUT_DIM * IN_DIM
                            + IN_DIM * OUT_DIM * IN_DIM      # T replication
                            + OUT_DIM * IN_DIM * OUT_DIM),   # S group-sum
        transcendentals=0,
        bytes_accessed=int(4 * n_rows * (EDGE_FEAT + IN_DIM + OUT_DIM)
                           + 2 * (w1.size + w2.size + w3.size + w4.size)))

    kernel = functools.partial(mpnn_message_kernel, act_dt=act_dt)

    out = pl.pallas_call(
        kernel,
        out_shape=jax.ShapeDtypeStruct((n_rows, OUT_DIM), jnp.float32),
        grid=grid,
        in_specs=[
            row_spec((tile_n, EDGE_FEAT)),            # e_vw tile
            row_spec((tile_n, IN_DIM)),               # h_w_rows tile
            bcast_spec(w1b.shape), bcast_spec(b1a.shape),
            bcast_spec(w2b.shape), bcast_spec(b2a.shape),
            bcast_spec(w3b.shape), bcast_spec(b3a.shape),
            bcast_spec(w4b.shape), bcast_spec(b4a.shape),
            bcast_spec(t_mat.shape), bcast_spec(s_mat.shape),
        ],
        out_specs=row_spec((tile_n, OUT_DIM)),
        compiler_params=pltpu.CompilerParams(dimension_semantics=("parallel",)),
        cost_estimate=cost,
    )(e_vw, hwr, w1b, b1a, w2b, b2a, w3b, b3a, w4b, b4a, t_mat, s_mat)

    return out


# ---------------- deterministic parameter init (PyTorch-Linear-style uniform) ----------------
def init_linear(key, fan_in, fan_out):
    kw, kb = jax.random.split(key)
    bound = 1.0 / np.sqrt(fan_in)
    w = jax.random.uniform(kw, (fan_in, fan_out), jnp.float32, -bound, bound)
    b = jax.random.uniform(kb, (1, fan_out), jnp.float32, -bound, bound)
    return w, b


def reference(h_v, h_w, e_vw, params):
    (w1, b1), (w2, b2), (w3, b3), (w4, b4) = params
    x = e_vw.reshape(-1, EDGE_FEAT)
    x = jnp.maximum(x @ w1 + b1, 0.0)
    x = jnp.maximum(x @ w2 + b2, 0.0)
    x = jnp.maximum(x @ w3 + b3, 0.0)
    eo = (x @ w4 + b4).reshape(-1, OUT_DIM, IN_DIM)
    hwr = jnp.broadcast_to(h_w[..., None],
                           (h_w.shape[0], h_w.shape[1], h_v.shape[1])).reshape(-1, IN_DIM)
    return jnp.einsum('nok,nk->no', eo, hwr)


if __name__ == "__main__":
    key = jax.random.PRNGKey(0)
    k_hv, k_hw, k_e, k1, k2, k3, k4 = jax.random.split(key, 7)

    # shapes follow the nmp_qc MPNN call convention:
    #   h_v: (B, n_nodes, IN), h_w: (B*n_nodes, IN), e_vw: (B*n_nodes*n_nodes, EDGE_FEAT)
    h_v = jax.random.normal(k_hv, (B, NNODES, IN_DIM), jnp.float32)
    h_w = jax.random.normal(k_hw, (B * NNODES, IN_DIM), jnp.float32)
    e_vw = jax.random.normal(k_e, (B * NNODES * NNODES, EDGE_FEAT), jnp.float32)

    params = (
        init_linear(k1, EDGE_FEAT, H1),
        init_linear(k2, H1, H2),
        init_linear(k3, H2, H3),
        init_linear(k4, H3, IN_DIM * OUT_DIM),
    )

    out = jax.block_until_ready(mpnn_message(h_v, h_w, e_vw, params))
    ref = jax.block_until_ready(reference(h_v, h_w, e_vw, params))

    assert out.shape == (B * NNODES * NNODES, OUT_DIM)
    # bf16 MXU operands (+ bf16 inter-layer activations on v6e/v7x) vs pure-f32 reference
    assert np.allclose(np.asarray(out), np.asarray(ref), rtol=5e-2, atol=5e-2)
    print("KERNEL_OK")
</pallas_src>

<mosaic_0001>
module attributes {stable_mosaic.version = 11 : i64} {
  func.func @mpnn_message_kernel(%arg0: i32, %arg1: memref<16x16xf32, #tpu.memory_space<vmem>>, %arg2: memref<16x8xf32, #tpu.memory_space<vmem>>, %arg3: memref<16x128xbf16, #tpu.memory_space<vmem>>, %arg4: memref<1x128xf32, #tpu.memory_space<vmem>>, %arg5: memref<128x256xbf16, #tpu.memory_space<vmem>>, %arg6: memref<1x256xf32, #tpu.memory_space<vmem>>, %arg7: memref<256x128xbf16, #tpu.memory_space<vmem>>, %arg8: memref<1x128xf32, #tpu.memory_space<vmem>>, %arg9: memref<128x128xbf16, #tpu.memory_space<vmem>>, %arg10: memref<1x128xf32, #tpu.memory_space<vmem>>, %arg11: memref<8x128xbf16, #tpu.memory_space<vmem>>, %arg12: memref<128x16xbf16, #tpu.memory_space<vmem>>, %arg13: memref<16x16xf32, #tpu.memory_space<vmem>>) attributes {dimension_semantics = [#tpu.dimension_semantics<parallel>], iteration_bounds = array<i64: 2>, scalar_prefetch = 0 : i64, scratch_operands = 0 : i64, tpu.core_type = #tpu.core_type<tc>, window_params = [{transform_indices = @transform_0, window_bounds = array<i64: 16, 16>}, {transform_indices = @transform_1, window_bounds = array<i64: 16, 8>}, {pipeline_mode = #tpu.pipeline_mode<synchronous>, transform_indices = @transform_2, window_bounds = array<i64: 16, 128>}, {pipeline_mode = #tpu.pipeline_mode<synchronous>, transform_indices = @transform_3, window_bounds = array<i64: 1, 128>}, {pipeline_mode = #tpu.pipeline_mode<synchronous>, transform_indices = @transform_4, window_bounds = array<i64: 128, 256>}, {pipeline_mode = #tpu.pipeline_mode<synchronous>, transform_indices = @transform_5, window_bounds = array<i64: 1, 256>}, {pipeline_mode = #tpu.pipeline_mode<synchronous>, transform_indices = @transform_6, window_bounds = array<i64: 256, 128>}, {pipeline_mode = #tpu.pipeline_mode<synchronous>, transform_indices = @transform_7, window_bounds = array<i64: 1, 128>}, {pipeline_mode = #tpu.pipeline_mode<synchronous>, transform_indices = @transform_8, window_bounds = array<i64: 128, 128>}, {pipeline_mode = #tpu.pipeline_mode<synchronous>, transform_indices = @transform_9, window_bounds = array<i64: 1, 128>}, {pipeline_mode = #tpu.pipeline_mode<synchronous>, transform_indices = @transform_10, window_bounds = array<i64: 8, 128>}, {pipeline_mode = #tpu.pipeline_mode<synchronous>, transform_indices = @transform_11, window_bounds = array<i64: 128, 16>}, {transform_indices = @transform_12, window_bounds = array<i64: 16, 16>}]} {
    %c0 = arith.constant 0 : index
    %c0_0 = arith.constant 0 : index
    %0 = vector.load %arg1[%c0, %c0_0] : memref<16x16xf32, #tpu.memory_space<vmem>>, vector<16x16xf32>
    %1 = arith.truncf %0 : vector<16x16xf32> to vector<16x16xbf16>
    %c0_1 = arith.constant 0 : index
    %c0_2 = arith.constant 0 : index
    %2 = vector.load %arg3[%c0_1, %c0_2] : memref<16x128xbf16, #tpu.memory_space<vmem>>, vector<16x128xbf16>
    %cst = arith.constant dense<0.000000e+00> : vector<16x128xf32>
    %3 = tpu.matmul %1, %2, %cst {dimension_numbers = #tpu.dot_dimension_numbers<[1], [0], [0], [1], [0, 0, 1, 1], [], []>} : vector<16x16xbf16>, vector<16x128xbf16>, vector<16x128xf32> -> vector<16x128xf32>
    %c0_3 = arith.constant 0 : index
    %c0_4 = arith.constant 0 : index
    %4 = vector.load %arg4[%c0_3, %c0_4] : memref<1x128xf32, #tpu.memory_space<vmem>>, vector<1x128xf32>
    %5 = vector.broadcast %4 : vector<1x128xf32> to vector<16x128xf32>
    %6 = arith.addf %3, %5 : vector<16x128xf32>
    %cst_5 = arith.constant 0.000000e+00 : f32
    %7 = vector.broadcast %cst_5 : f32 to vector<16x128xf32>
    %8 = arith.maximumf %6, %7 : vector<16x128xf32>
    %9 = arith.truncf %8 : vector<16x128xf32> to vector<16x128xbf16>
    %c0_6 = arith.constant 0 : index
    %c0_7 = arith.constant 0 : index
    %10 = vector.load %arg5[%c0_6, %c0_7] : memref<128x256xbf16, #tpu.memory_space<vmem>>, vector<128x256xbf16>
    %cst_8 = arith.constant dense<0.000000e+00> : vector<16x256xf32>
    %11 = tpu.matmul %9, %10, %cst_8 {dimension_numbers = #tpu.dot_dimension_numbers<[1], [0], [0], [1], [0, 0, 1, 1], [], []>} : vector<16x128xbf16>, vector<128x256xbf16>, vector<16x256xf32> -> vector<16x256xf32>
    %c0_9 = arith.constant 0 : index
    %c0_10 = arith.constant 0 : index
    %12 = vector.load %arg6[%c0_9, %c0_10] : memref<1x256xf32, #tpu.memory_space<vmem>>, vector<1x256xf32>
    %13 = vector.broadcast %12 : vector<1x256xf32> to vector<16x256xf32>
    %14 = arith.addf %11, %13 : vector<16x256xf32>
    %cst_11 = arith.constant 0.000000e+00 : f32
    %15 = vector.broadcast %cst_11 : f32 to vector<16x256xf32>
    %16 = arith.maximumf %14, %15 : vector<16x256xf32>
    %17 = arith.truncf %16 : vector<16x256xf32> to vector<16x256xbf16>
    %c0_12 = arith.constant 0 : index
    %c0_13 = arith.constant 0 : index
    %18 = vector.load %arg7[%c0_12, %c0_13] : memref<256x128xbf16, #tpu.memory_space<vmem>>, vector<256x128xbf16>
    %cst_14 = arith.constant dense<0.000000e+00> : vector<16x128xf32>
    %19 = tpu.matmul %17, %18, %cst_14 {dimension_numbers = #tpu.dot_dimension_numbers<[1], [0], [0], [1], [0, 0, 1, 1], [], []>} : vector<16x256xbf16>, vector<256x128xbf16>, vector<16x128xf32> -> vector<16x128xf32>
    %c0_15 = arith.constant 0 : index
    %c0_16 = arith.constant 0 : index
    %20 = vector.load %arg8[%c0_15, %c0_16] : memref<1x128xf32, #tpu.memory_space<vmem>>, vector<1x128xf32>
    %21 = vector.broadcast %20 : vector<1x128xf32> to vector<16x128xf32>
    %22 = arith.addf %19, %21 : vector<16x128xf32>
    %cst_17 = arith.constant 0.000000e+00 : f32
    %23 = vector.broadcast %cst_17 : f32 to vector<16x128xf32>
    %24 = arith.maximumf %22, %23 : vector<16x128xf32>
    %25 = arith.truncf %24 : vector<16x128xf32> to vector<16x128xbf16>
    %c0_18 = arith.constant 0 : index
    %c0_19 = arith.constant 0 : index
    %26 = vector.load %arg9[%c0_18, %c0_19] : memref<128x128xbf16, #tpu.memory_space<vmem>>, vector<128x128xbf16>
    %cst_20 = arith.constant dense<0.000000e+00> : vector<16x128xf32>
    %27 = tpu.matmul %25, %26, %cst_20 {dimension_numbers = #tpu.dot_dimension_numbers<[1], [0], [0], [1], [0, 0, 1, 1], [], []>} : vector<16x128xbf16>, vector<128x128xbf16>, vector<16x128xf32> -> vector<16x128xf32>
    %c0_21 = arith.constant 0 : index
    %c0_22 = arith.constant 0 : index
    %28 = vector.load %arg10[%c0_21, %c0_22] : memref<1x128xf32, #tpu.memory_space<vmem>>, vector<1x128xf32>
    %29 = vector.broadcast %28 : vector<1x128xf32> to vector<16x128xf32>
    %30 = arith.addf %27, %29 : vector<16x128xf32>
    %c0_23 = arith.constant 0 : index
    %c0_24 = arith.constant 0 : index
    %31 = vector.load %arg2[%c0_23, %c0_24] : memref<16x8xf32, #tpu.memory_space<vmem>>, vector<16x8xf32>
    %32 = arith.truncf %31 : vector<16x8xf32> to vector<16x8xbf16>
    %c0_25 = arith.constant 0 : index
    %c0_26 = arith.constant 0 : index
    %33 = vector.load %arg11[%c0_25, %c0_26] : memref<8x128xbf16, #tpu.memory_space<vmem>>, vector<8x128xbf16>
    %cst_27 = arith.constant dense<0.000000e+00> : vector<16x128xf32>
    %34 = tpu.matmul %32, %33, %cst_27 {dimension_numbers = #tpu.dot_dimension_numbers<[1], [0], [0], [1], [0, 0, 1, 1], [], []>} : vector<16x8xbf16>, vector<8x128xbf16>, vector<16x128xf32> -> vector<16x128xf32>
    %35 = arith.mulf %30, %34 : vector<16x128xf32>
    %36 = arith.truncf %35 : vector<16x128xf32> to vector<16x128xbf16>
    %c0_28 = arith.constant 0 : index
    %c0_29 = arith.constant 0 : index
    %37 = vector.load %arg12[%c0_28, %c0_29] : memref<128x16xbf16, #tpu.memory_space<vmem>>, vector<128x16xbf16>
    %cst_30 = arith.constant dense<0.000000e+00> : vector<16x16xf32>
    %38 = tpu.matmul %36, %37, %cst_30 {dimension_numbers = #tpu.dot_dimension_numbers<[1], [0], [0], [1], [0, 0, 1, 1], [], []>} : vector<16x128xbf16>, vector<128x16xbf16>, vector<16x16xf32> -> vector<16x16xf32>
    %c0_31 = arith.constant 0 : index
    %c0_32 = arith.constant 0 : index
    %39 = vector.load %arg13[%c0_31, %c0_32] : memref<16x16xf32, #tpu.memory_space<vmem>>, vector<16x16xf32>
    tpu.vector_store %arg13[%c0_31, %c0_32], %38 {strides = array<i32>} : memref<16x16xf32, #tpu.memory_space<vmem>>, vector<16x16xf32>,
    return
  }
  func.func @transform_0(%arg0: i32) -> (i32, i32) {
    %c0_i32 = arith.constant 0 : i32
    %c0_i32_0 = arith.constant 0 : i32
    return %arg0, %c0_i32 : i32, i32
  }
  func.func @transform_1(%arg0: i32) -> (i32, i32) {
    %c0_i32 = arith.constant 0 : i32
    %c0_i32_0 = arith.constant 0 : i32
    return %arg0, %c0_i32 : i32, i32
  }
  func.func @transform_2(%arg0: i32) -> (i32, i32) {
    %c0_i32 = arith.constant 0 : i32
    %c0_i32_0 = arith.constant 0 : i32
    %c0_i32_1 = arith.constant 0 : i32
    return %c0_i32, %c0_i32_0 : i32, i32
  }
  func.func @transform_3(%arg0: i32) -> (i32, i32) {
    %c0_i32 = arith.constant 0 : i32
    %c0_i32_0 = arith.constant 0 : i32
    %c0_i32_1 = arith.constant 0 : i32
    return %c0_i32, %c0_i32_0 : i32, i32
  }
  func.func @transform_4(%arg0: i32) -> (i32, i32) {
    %c0_i32 = arith.constant 0 : i32
    %c0_i32_0 = arith.constant 0 : i32
    %c0_i32_1 = arith.constant 0 : i32
    return %c0_i32, %c0_i32_0 : i32, i32
  }
  func.func @transform_5(%arg0: i32) -> (i32, i32) {
    %c0_i32 = arith.constant 0 : i32
    %c0_i32_0 = arith.constant 0 : i32
    %c0_i32_1 = arith.constant 0 : i32
    return %c0_i32, %c0_i32_0 : i32, i32
  }
  func.func @transform_6(%arg0: i32) -> (i32, i32) {
    %c0_i32 = arith.constant 0 : i32
    %c0_i32_0 = arith.constant 0 : i32
    %c0_i32_1 = arith.constant 0 : i32
    return %c0_i32, %c0_i32_0 : i32, i32
  }
  func.func @transform_7(%arg0: i32) -> (i32, i32) {
    %c0_i32 = arith.constant 0 : i32
    %c0_i32_0 = arith.constant 0 : i32
    %c0_i32_1 = arith.constant 0 : i32
    return %c0_i32, %c0_i32_0 : i32, i32
  }
  func.func @transform_8(%arg0: i32) -> (i32, i32) {
    %c0_i32 = arith.constant 0 : i32
    %c0_i32_0 = arith.constant 0 : i32
    %c0_i32_1 = arith.constant 0 : i32
    return %c0_i32, %c0_i32_0 : i32, i32
  }
  func.func @transform_9(%arg0: i32) -> (i32, i32) {
    %c0_i32 = arith.constant 0 : i32
    %c0_i32_0 = arith.constant 0 : i32
    %c0_i32_1 = arith.constant 0 : i32
    return %c0_i32, %c0_i32_0 : i32, i32
  }
  func.func @transform_10(%arg0: i32) -> (i32, i32) {
    %c0_i32 = arith.constant 0 : i32
    %c0_i32_0 = arith.constant 0 : i32
    %c0_i32_1 = arith.constant 0 : i32
    return %c0_i32, %c0_i32_0 : i32, i32
  }
  func.func @transform_11(%arg0: i32) -> (i32, i32) {
    %c0_i32 = arith.constant 0 : i32
    %c0_i32_0 = arith.constant 0 : i32
    %c0_i32_1 = arith.constant 0 : i32
    return %c0_i32, %c0_i32_0 : i32, i32
  }
  func.func @transform_12(%arg0: i32) -> (i32, i32) {
    %c0_i32 = arith.constant 0 : i32
    %c0_i32_0 = arith.constant 0 : i32
    return %arg0, %c0_i32 : i32, i32
  }
}

</mosaic_0001>

<llo_original>
// kernel: tpu_custom_call.1
$region0: #{tpu_custom_call.1}
  #allocation0 [shape = 'u32[]', space=smem, size = 0x4, offset = 0x4, fixed_abs, tag = 'smem constant byte address 0x4 - core index']
  #allocation1 [shape = 'u32[144,128]{1,0:T(1,128)}', space=vmem, size = 0x12000, scoped, tag = 'internal scratch']
  %s0 = inlined_call_operand.vmem [shape: f32[32,16], index: 0, kind: input, shape index: {}]
  %s1 = inlined_call_operand.vmem [shape: f32[32,8], index: 1, kind: input, shape index: {}]
  %s2 = inlined_call_operand.vmem [shape: bf16[16,128], index: 2, kind: input, shape index: {}]
  %s3 = inlined_call_operand.vmem [shape: f32[1,128], index: 3, kind: input, shape index: {}]
  %s4 = inlined_call_operand.vmem [shape: bf16[128,256], index: 4, kind: input, shape index: {}]
  %s5 = inlined_call_operand.vmem [shape: f32[1,256], index: 5, kind: input, shape index: {}]
  %s6 = inlined_call_operand.hbm [shape: bf16[256,128], index: 6, kind: input, shape index: {}]
  %s7 = inlined_call_operand.vmem [shape: f32[1,128], index: 7, kind: input, shape index: {}]
  %s8 = inlined_call_operand.hbm [shape: bf16[128,128], index: 8, kind: input, shape index: {}]
  %s9 = inlined_call_operand.vmem [shape: f32[1,128], index: 9, kind: input, shape index: {}]
  %s10 = inlined_call_operand.vmem [shape: bf16[8,128], index: 10, kind: input, shape index: {}]
  %s11 = inlined_call_operand.vmem [shape: bf16[128,16], index: 11, kind: input, shape index: {}]
  %s12 = inlined_call_operand.vmem [shape: f32[32,16], index: 12, kind: output, shape index: {}]
  %s13 = sld [smem:[#allocation0]]
  $region89: #{tpu_custom_call.1} parent=0
    _
  %s15 = ssub.s32 1, %s13
  %s16 = scalar_select 0, %s15, %s13
  $region1: #{tpu_custom_call.1} parent=0
    #allocation2 [shape = 'u8[65536]{0}', space=vmem, size = 0x10000, scoped, tag = 'input window, operand 6, single buffered']
    #allocation3 [shape = 's32[2]{0}', space=sflag, size = 0x8, scoped, tag = 'scoped memory for tpu_custom_call.1']
    #allocation4 [shape = 'u8[32768]{0}', space=vmem, size = 0x8000, scoped, tag = 'input window, operand 8, single buffered']
    #allocation5 [shape = 's32[1]{0}', space=sflag, size = 0x4, scoped, tag = 'scoped memory for tpu_custom_call.1']
    %17 = vsyncpa [#allocation3], 0
    %18 = vsyncpa [#allocation5], 0
    loop: start=0, step=1, limit=4
    $region2: #{tpu_custom_call.1} parent=1 // loop_pre_header
      _
    $region3: #{tpu_custom_call.1} parent=1 // loop_header
      %s20 = sphi 0, %s24
      %p21 = scmp.ge.s32.totalorder %s20, 4
      %s30 = sphi 0, %s32
      %s33 = sphi 0, %s30
      %s34 = sphi 0, %s33
      %s50 = sphi 0, %s34
      %s56 = sphi 0, %s58
      %s59 = sphi 0, %s56
      %s60 = sphi 0, %s59
      %s76 = sphi 0, %s60
      %s80 = sphi 0, %s80
      %s82 = sphi 0, %s80
      %s83 = sphi 0, %s82
      %s97 = sphi 0, %s83
      %s101 = sphi 0, %s101
      %s103 = sphi 0, %s101
      %s104 = sphi 0, %s103
      %s118 = sphi 0, %s104
      %s122 = sphi 0, %s122
      %s124 = sphi 0, %s122
      %s125 = sphi 0, %s124
      %s139 = sphi 0, %s125
      %s143 = sphi 0, %s143
      %s145 = sphi 0, %s143
      %s146 = sphi 0, %s145
      %s160 = sphi 0, %s146
      %s164 = sphi 0, %s164
      %s166 = sphi 0, %s164
      %s167 = sphi 0, %s166
      %s181 = sphi 0, %s167
      %s185 = sphi 0, %s185
      %s187 = sphi 0, %s185
      %s188 = sphi 0, %s187
      %s202 = sphi 0, %s188
      %s206 = sphi 0, %s206
      %s208 = sphi 0, %s206
      %s209 = sphi 0, %s208
      %s223 = sphi 0, %s209
      %s227 = sphi 0, %s227
      %s229 = sphi 0, %s227
      %s230 = sphi 0, %s229
      %s244 = sphi 0, %s230
      %s248 = sphi 0, %s248
      %s250 = sphi 0, %s248
      %s251 = sphi 0, %s250
      %s265 = sphi 0, %s251
      %s269 = sphi 0, %s269
      %s271 = sphi 0, %s269
      %s272 = sphi 0, %s271
      %s286 = sphi 0, %s272
      %s292 = sphi 0, %s294
      %s295 = sphi 0, %s292
      %s296 = sphi 0, %s295
      %s312 = sphi 0, %s296
    $region4: #{tpu_custom_call.1} parent=1 // loop_header_branch
      %23 = sbr.rel (%p21) target = $region8
    $region5: #{tpu_custom_call.1} parent=1 // loop_body
      %s25 = ssub.s32 %s20, 1
      %s26 = ssub.s32 %s20, 2
      %s27 = sadd.s32 %s20, 1
      %s28 = ssub.s32 %s20, %s27
      %p29 = scmp.eq.s32.totalorder %s28, 0
      %s31 = sadd.s32 %s30, 1
      %s32 = scalar_select %p29, %s30, %s31
      %p35 = pneg %p29
      %p36 = scmp.eq.s32.totalorder %s20, 1
      %p37 = por %p35, %p36
      %p38 = scmp.ne.s32.totalorder %s30, %s33
      %p39 = scmp.eq.s32.totalorder %s20, 0
      %p40 = por %p38, %p39
      %p41 = scmp.ne.s32.totalorder %s30, %s33
      %p42 = scmp.eq.s32.totalorder %s25, 1
      %p43 = por %p41, %p42
      %p44 = scmp.ne.s32.totalorder %s33, %s34
      %p45 = scmp.eq.s32.totalorder %s25, 0
      %p46 = por %p44, %p45
      %p47 = scmp.ne.s32.totalorder %s33, %s34
      %p48 = scmp.eq.s32.totalorder %s26, 1
      %p49 = por %p47, %p48
      %p51 = scmp.ne.s32.totalorder %s34, %s50
      %p52 = scmp.eq.s32.totalorder %s26, 0
      %p53 = por %p51, %p52
      %s54 = ssub.s32 %s20, %s27
      %p55 = scmp.eq.s32.totalorder %s54, 0
      %s57 = sadd.s32 %s56, 1
      %s58 = scalar_select %p55, %s56, %s57
      %p61 = pneg %p55
      %p62 = scmp.eq.s32.totalorder %s20, 1
      %p63 = por %p61, %p62
      %p64 = scmp.ne.s32.totalorder %s56, %s59
      %p65 = scmp.eq.s32.totalorder %s20, 0
      %p66 = por %p64, %p65
      %p67 = scmp.ne.s32.totalorder %s56, %s59
      %p68 = scmp.eq.s32.totalorder %s25, 1
      %p69 = por %p67, %p68
      %p70 = scmp.ne.s32.totalorder %s59, %s60
      %p71 = scmp.eq.s32.totalorder %s25, 0
      %p72 = por %p70, %p71
      %p73 = scmp.ne.s32.totalorder %s59, %s60
      %p74 = scmp.eq.s32.totalorder %s26, 1
      %p75 = por %p73, %p74
      %p77 = scmp.ne.s32.totalorder %s60, %s76
      %p78 = scmp.eq.s32.totalorder %s26, 0
      %p79 = por %p77, %p78
      %s81 = sadd.s32 %s80, 1
      %p84 = scmp.eq.s32.totalorder %s20, 1
      %p85 = scmp.ne.s32.totalorder %s80, %s82
      %p86 = scmp.eq.s32.totalorder %s20, 0
      %p87 = por %p85, %p86
      %p88 = scmp.ne.s32.totalorder %s80, %s82
      %p89 = scmp.eq.s32.totalorder %s25, 1
      %p90 = por %p88, %p89
      %p91 = scmp.ne.s32.totalorder %s82, %s83
      %p92 = scmp.eq.s32.totalorder %s25, 0
      %p93 = por %p91, %p92
      %p94 = scmp.ne.s32.totalorder %s82, %s83
      %p95 = scmp.eq.s32.totalorder %s26, 1
      %p96 = por %p94, %p95
      %p98 = scmp.ne.s32.totalorder %s83, %s97
      %p99 = scmp.eq.s32.totalorder %s26, 0
      %p100 = por %p98, %p99
      %s102 = sadd.s32 %s101, 1
      %p105 = scmp.eq.s32.totalorder %s20, 1
      %p106 = scmp.ne.s32.totalorder %s101, %s103
      %p107 = scmp.eq.s32.totalorder %s20, 0
      %p108 = por %p106, %p107
      %p109 = scmp.ne.s32.totalorder %s101, %s103
      %p110 = scmp.eq.s32.totalorder %s25, 1
      %p111 = por %p109, %p110
      %p112 = scmp.ne.s32.totalorder %s103, %s104
      %p113 = scmp.eq.s32.totalorder %s25, 0
      %p114 = por %p112, %p113
      %p115 = scmp.ne.s32.totalorder %s103, %s104
      %p116 = scmp.eq.s32.totalorder %s26, 1
      %p117 = por %p115, %p116
      %p119 = scmp.ne.s32.totalorder %s104, %s118
      %p120 = scmp.eq.s32.totalorder %s26, 0
      %p121 = por %p119, %p120
      %s123 = sadd.s32 %s122, 1
      %p126 = scmp.eq.s32.totalorder %s20, 1
      %p127 = scmp.ne.s32.totalorder %s122, %s124
      %p128 = scmp.eq.s32.totalorder %s20, 0
      %p129 = por %p127, %p128
      %p130 = scmp.ne.s32.totalorder %s122, %s124
      %p131 = scmp.eq.s32.totalorder %s25, 1
      %p132 = por %p130, %p131
      %p133 = scmp.ne.s32.totalorder %s124, %s125
      %p134 = scmp.eq.s32.totalorder %s25, 0
      %p135 = por %p133, %p134
      %p136 = scmp.ne.s32.totalorder %s124, %s125
      %p137 = scmp.eq.s32.totalorder %s26, 1
      %p138 = por %p136, %p137
      %p140 = scmp.ne.s32.totalorder %s125, %s139
      %p141 = scmp.eq.s32.totalorder %s26, 0
      %p142 = por %p140, %p141
      %s144 = sadd.s32 %s143, 1
      %p147 = scmp.eq.s32.totalorder %s20, 1
      %p148 = scmp.ne.s32.totalorder %s143, %s145
      %p149 = scmp.eq.s32.totalorder %s20, 0
      %p150 = por %p148, %p149
      %p151 = scmp.ne.s32.totalorder %s143, %s145
      %p152 = scmp.eq.s32.totalorder %s25, 1
      %p153 = por %p151, %p152
      %p154 = scmp.ne.s32.totalorder %s145, %s146
      %p155 = scmp.eq.s32.totalorder %s25, 0
      %p156 = por %p154, %p155
      %p157 = scmp.ne.s32.totalorder %s145, %s146
      %p158 = scmp.eq.s32.totalorder %s26, 1
      %p159 = por %p157, %p158
      %p161 = scmp.ne.s32.totalorder %s146, %s160
      %p162 = scmp.eq.s32.totalorder %s26, 0
      %p163 = por %p161, %p162
      %s165 = sadd.s32 %s164, 1
      %p168 = scmp.eq.s32.totalorder %s20, 1
      %p169 = scmp.ne.s32.totalorder %s164, %s166
      %p170 = scmp.eq.s32.totalorder %s20, 0
      %p171 = por %p169, %p170
      %p172 = scmp.ne.s32.totalorder %s164, %s166
      %p173 = scmp.eq.s32.totalorder %s25, 1
      %p174 = por %p172, %p173
      %p175 = scmp.ne.s32.totalorder %s166, %s167
      %p176 = scmp.eq.s32.totalorder %s25, 0
      %p177 = por %p175, %p176
      %p178 = scmp.ne.s32.totalorder %s166, %s167
      %p179 = scmp.eq.s32.totalorder %s26, 1
      %p180 = por %p178, %p179
      %p182 = scmp.ne.s32.totalorder %s167, %s181
      %p183 = scmp.eq.s32.totalorder %s26, 0
      %p184 = por %p182, %p183
      %s186 = sadd.s32 %s185, 1
      %p189 = scmp.eq.s32.totalorder %s20, 1
      %p190 = scmp.ne.s32.totalorder %s185, %s187
      %p191 = scmp.eq.s32.totalorder %s20, 0
      %p192 = por %p190, %p191
      %p193 = scmp.ne.s32.totalorder %s185, %s187
      %p194 = scmp.eq.s32.totalorder %s25, 1
      %p195 = por %p193, %p194
      %p196 = scmp.ne.s32.totalorder %s187, %s188
      %p197 = scmp.eq.s32.totalorder %s25, 0
      %p198 = por %p196, %p197
      %p199 = scmp.ne.s32.totalorder %s187, %s188
      %p200 = scmp.eq.s32.totalorder %s26, 1
      %p201 = por %p199, %p200
      %p203 = scmp.ne.s32.totalorder %s188, %s202
      %p204 = scmp.eq.s32.totalorder %s26, 0
      %p205 = por %p203, %p204
      %s207 = sadd.s32 %s206, 1
      %p210 = scmp.eq.s32.totalorder %s20, 1
      %p211 = scmp.ne.s32.totalorder %s206, %s208
      %p212 = scmp.eq.s32.totalorder %s20, 0
      %p213 = por %p211, %p212
      %p214 = scmp.ne.s32.totalorder %s206, %s208
      %p215 = scmp.eq.s32.totalorder %s25, 1
      %p216 = por %p214, %p215
      %p217 = scmp.ne.s32.totalorder %s208, %s209
      %p218 = scmp.eq.s32.totalorder %s25, 0
      %p219 = por %p217, %p218
      %p220 = scmp.ne.s32.totalorder %s208, %s209
      %p221 = scmp.eq.s32.totalorder %s26, 1
      %p222 = por %p220, %p221
      %p224 = scmp.ne.s32.totalorder %s209, %s223
      %p225 = scmp.eq.s32.totalorder %s26, 0
      %p226 = por %p224, %p225
      %s228 = sadd.s32 %s227, 1
      %p231 = scmp.eq.s32.totalorder %s20, 1
      %p232 = scmp.ne.s32.totalorder %s227, %s229
      %p233 = scmp.eq.s32.totalorder %s20, 0
      %p234 = por %p232, %p233
      %p235 = scmp.ne.s32.totalorder %s227, %s229
      %p236 = scmp.eq.s32.totalorder %s25, 1
      %p237 = por %p235, %p236
      %p238 = scmp.ne.s32.totalorder %s229, %s230
      %p239 = scmp.eq.s32.totalorder %s25, 0
      %p240 = por %p238, %p239
      %p241 = scmp.ne.s32.totalorder %s229, %s230
      %p242 = scmp.eq.s32.totalorder %s26, 1
      %p243 = por %p241, %p242
      %p245 = scmp.ne.s32.totalorder %s230, %s244
      %p246 = scmp.eq.s32.totalorder %s26, 0
      %p247 = por %p245, %p246
      %s249 = sadd.s32 %s248, 1
      %p252 = scmp.eq.s32.totalorder %s20, 1
      %p253 = scmp.ne.s32.totalorder %s248, %s250
      %p254 = scmp.eq.s32.totalorder %s20, 0
      %p255 = por %p253, %p254
      %p256 = scmp.ne.s32.totalorder %s248, %s250
      %p257 = scmp.eq.s32.totalorder %s25, 1
      %p258 = por %p256, %p257
      %p259 = scmp.ne.s32.totalorder %s250, %s251
      %p260 = scmp.eq.s32.totalorder %s25, 0
      %p261 = por %p259, %p260
      %p262 = scmp.ne.s32.totalorder %s250, %s251
      %p263 = scmp.eq.s32.totalorder %s26, 1
      %p264 = por %p262, %p263
      %p266 = scmp.ne.s32.totalorder %s251, %s265
      %p267 = scmp.eq.s32.totalorder %s26, 0
      %p268 = por %p266, %p267
      %s270 = sadd.s32 %s269, 1
      %p273 = scmp.eq.s32.totalorder %s20, 1
      %p274 = scmp.ne.s32.totalorder %s269, %s271
      %p275 = scmp.eq.s32.totalorder %s20, 0
      %p276 = por %p274, %p275
      %p277 = scmp.ne.s32.totalorder %s269, %s271
      %p278 = scmp.eq.s32.totalorder %s25, 1
      %p279 = por %p277, %p278
      %p280 = scmp.ne.s32.totalorder %s271, %s272
      %p281 = scmp.eq.s32.totalorder %s25, 0
      %p282 = por %p280, %p281
      %p283 = scmp.ne.s32.totalorder %s271, %s272
      %p284 = scmp.eq.s32.totalorder %s26, 1
      %p285 = por %p283, %p284
      %p287 = scmp.ne.s32.totalorder %s272, %s286
      %p288 = scmp.eq.s32.totalorder %s26, 0
      %p289 = por %p287, %p288
      %s290 = ssub.s32 %s20, %s27
      %p291 = scmp.eq.s32.totalorder %s290, 0
      %s293 = sadd.s32 %s292, 1
      %s294 = scalar_select %p291, %s292, %s293
      %p297 = pneg %p291
      %p298 = scmp.eq.s32.totalorder %s20, 1
      %p299 = por %p297, %p298
      %p300 = scmp.ne.s32.totalorder %s292, %s295
      %p301 = scmp.eq.s32.totalorder %s20, 0
      %p302 = por %p300, %p301
      %p303 = scmp.ne.s32.totalorder %s292, %s295
      %p304 = scmp.eq.s32.totalorder %s25, 1
      %p305 = por %p303, %p304
      %p306 = scmp.ne.s32.totalorder %s295, %s296
      %p307 = scmp.eq.s32.totalorder %s25, 0
      %p308 = por %p306, %p307
      %p309 = scmp.ne.s32.totalorder %s295, %s296
      %p310 = scmp.eq.s32.totalorder %s26, 1
      %p311 = por %p309, %p310
      %p313 = scmp.ne.s32.totalorder %s296, %s312
      %p314 = scmp.eq.s32.totalorder %s26, 0
      %p315 = por %p313, %p314
      %p316 = scmp.le.s32.totalorder 1, %s20
      %p317 = scmp.lt.s32.totalorder %s20, 3
      %p318 = pnand %p316, %p317
      %p319 = pneg %p318
      // Predicated region
      $region9: #{tpu_custom_call.1} parent=5 // pred_check
        _
      $region10: #{tpu_custom_call.1} parent=5 // pred_check_branch
        %321 = sbr.rel (%p318) target = $region12
      $region11: #{tpu_custom_call.1} parent=5 // pred_region
        %s322 = ssub.s32 %s20, 1
        // Predicated region
        $region13: #{tpu_custom_call.1} parent=11 // pred_check
          %p323 = pneg %p93
        $region14: #{tpu_custom_call.1} parent=11 // pred_check_branch
          %325 = sbr.rel (%p323) target = $region16
        $region15: #{tpu_custom_call.1} parent=11 // pred_region
          _
        $region16: #{tpu_custom_call.1} parent=11 // pred_fallthru
          _
        // Predicated region
        $region17: #{tpu_custom_call.1} parent=11 // pred_check
          %p326 = pneg %p114
        $region18: #{tpu_custom_call.1} parent=11 // pred_check_branch
          %328 = sbr.rel (%p326) target = $region20
        $region19: #{tpu_custom_call.1} parent=11 // pred_region
          _
        $region20: #{tpu_custom_call.1} parent=11 // pred_fallthru
          _
        // Predicated region
        $region21: #{tpu_custom_call.1} parent=11 // pred_check
          %p329 = pneg %p135
        $region22: #{tpu_custom_call.1} parent=11 // pred_check_branch
          %331 = sbr.rel (%p329) target = $region24
        $region23: #{tpu_custom_call.1} parent=11 // pred_region
          _
        $region24: #{tpu_custom_call.1} parent=11 // pred_fallthru
          _
        // Predicated region
        $region25: #{tpu_custom_call.1} parent=11 // pred_check
          %p332 = pneg %p156
        $region26: #{tpu_custom_call.1} parent=11 // pred_check_branch
          %334 = sbr.rel (%p332) target = $region28
        $region27: #{tpu_custom_call.1} parent=11 // pred_region
          _
        $region28: #{tpu_custom_call.1} parent=11 // pred_fallthru
          _
        // Predicated region
        $region29: #{tpu_custom_call.1} parent=11 // pred_check
          %p335 = pneg %p177
        $region30: #{tpu_custom_call.1} parent=11 // pred_check_branch
          %337 = sbr.rel (%p335) target = $region32
        $region31: #{tpu_custom_call.1} parent=11 // pred_region
          %s339 = ssub.s32 2048, 2048
          %340 = vsyncadd [#allocation3], %s339
          %s341 = sshll.u32 [#allocation2], 4
          %s342 = int_to_ptr.vmem [resolvable:$true] %s341
          %347 = dma.hbm_to_vmem [thread:$0]  %s6, 2048, %s342, [#allocation3], 64, 64, 4
        $region32: #{tpu_custom_call.1} parent=11 // pred_fallthru
          _
        // Predicated region
        $region33: #{tpu_custom_call.1} parent=11 // pred_check
          %p348 = pneg %p198
        $region34: #{tpu_custom_call.1} parent=11 // pred_check_branch
          %350 = sbr.rel (%p348) target = $region36
        $region35: #{tpu_custom_call.1} parent=11 // pred_region
          _
        $region36: #{tpu_custom_call.1} parent=11 // pred_fallthru
          _
        // Predicated region
        $region37: #{tpu_custom_call.1} parent=11 // pred_check
          %p351 = pneg %p219
        $region38: #{tpu_custom_call.1} parent=11 // pred_check_branch
          %353 = sbr.rel (%p351) target = $region40
        $region39: #{tpu_custom_call.1} parent=11 // pred_region
          %s355 = ssub.s32 1024, 1024
          %356 = vsyncadd [#allocation5], %s355
          %s357 = sshll.u32 [#allocation4], 4
          %s358 = int_to_ptr.vmem [resolvable:$true] %s357
          %363 = dma.hbm_to_vmem [thread:$0]  %s8, 1024, %s358, [#allocation5], 64, 64, 4
        $region40: #{tpu_custom_call.1} parent=11 // pred_fallthru
          _
        // Predicated region
        $region41: #{tpu_custom_call.1} parent=11 // pred_check
          %p364 = pneg %p240
        $region42: #{tpu_custom_call.1} parent=11 // pred_check_branch
          %366 = sbr.rel (%p364) target = $region44
        $region43: #{tpu_custom_call.1} parent=11 // pred_region
          _
        $region44: #{tpu_custom_call.1} parent=11 // pred_fallthru
          _
        // Predicated region
        $region45: #{tpu_custom_call.1} parent=11 // pred_check
          %p367 = pneg %p261
        $region46: #{tpu_custom_call.1} parent=11 // pred_check_branch
          %369 = sbr.rel (%p367) target = $region48
        $region47: #{tpu_custom_call.1} parent=11 // pred_region
          _
        $region48: #{tpu_custom_call.1} parent=11 // pred_fallthru
          _
        // Predicated region
        $region49: #{tpu_custom_call.1} parent=11 // pred_check
          %p370 = pneg %p282
        $region50: #{tpu_custom_call.1} parent=11 // pred_check_branch
          %372 = sbr.rel (%p370) target = $region52
        $region51: #{tpu_custom_call.1} parent=11 // pred_region
          _
        $region52: #{tpu_custom_call.1} parent=11 // pred_fallthru
          _
      $region12: #{tpu_custom_call.1} parent=5 // pred_fallthru
        _
      %p373 = scmp.lt.s32.totalorder %s20, 2
      // Predicated region
      $region53: #{tpu_custom_call.1} parent=5 // pred_check
        %p374 = pneg %p373
      $region54: #{tpu_custom_call.1} parent=5 // pred_check_branch
        %376 = sbr.rel (%p374) target = $region56
      $region55: #{tpu_custom_call.1} parent=5 // pred_region
        // Predicated region
        $region57: #{tpu_custom_call.1} parent=55 // pred_check
          %p377 = pneg %p40
        $region58: #{tpu_custom_call.1} parent=55 // pred_check_branch
          %379 = sbr.rel (%p377) target = $region60
        $region59: #{tpu_custom_call.1} parent=55 // pred_region
          %s380 = smul.u32 2, %s20
          %p381 = scmp.lt.s32.totalorder %s380, 3
          %s382 = scalar_select %p381, %s380, 3
          %s383 = smul.addr %s382, 8
          %s384 = scalar_lea.vmem %s0, %s383
          %s385 = smul.u32 2, %s20
        $region60: #{tpu_custom_call.1} parent=55 // pred_fallthru
          _
        // Predicated region
        $region61: #{tpu_custom_call.1} parent=55 // pred_check
          %p386 = pneg %p66
        $region62: #{tpu_custom_call.1} parent=55 // pred_check_branch
          %388 = sbr.rel (%p386) target = $region64
        $region63: #{tpu_custom_call.1} parent=55 // pred_region
          %s389 = smul.u32 2, %s20
          %p390 = scmp.lt.s32.totalorder %s389, 3
          %s391 = scalar_select %p390, %s389, 3
          %s392 = smul.addr %s391, 8
          %s393 = scalar_lea.vmem %s1, %s392
          %s394 = smul.u32 2, %s20
        $region64: #{tpu_custom_call.1} parent=55 // pred_fallthru
          _
      $region56: #{tpu_custom_call.1} parent=5 // pred_fallthru
        _
      %p395 = scmp.le.s32.totalorder 1, %s20
      %p396 = scmp.lt.s32.totalorder %s20, 3
      %p397 = pnand %p395, %p396
      %p398 = pneg %p397
      // Predicated region
      $region65: #{tpu_custom_call.1} parent=5 // pred_check
        _
      $region66: #{tpu_custom_call.1} parent=5 // pred_check_branch
        %400 = sbr.rel (%p397) target = $region68
      $region67: #{tpu_custom_call.1} parent=5 // pred_region
        %s401 = ssub.s32 %s20, 1
        // Predicated region
        $region69: #{tpu_custom_call.1} parent=67 // pred_check
          %p402 = pneg %p177
        $region70: #{tpu_custom_call.1} parent=67 // pred_check_branch
          %404 = sbr.rel (%p402) target = $region72
        $region71: #{tpu_custom_call.1} parent=67 // pred_region
          %405 = dma.done [#allocation3], 2048
        $region72: #{tpu_custom_call.1} parent=67 // pred_fallthru
          _
        // Predicated region
        $region73: #{tpu_custom_call.1} parent=67 // pred_check
          %p406 = pneg %p219
        $region74: #{tpu_custom_call.1} parent=67 // pred_check_branch
          %408 = sbr.rel (%p406) target = $region76
        $region75: #{tpu_custom_call.1} parent=67 // pred_region
          %409 = dma.done [#allocation5], 1024
        $region76: #{tpu_custom_call.1} parent=67 // pred_fallthru
          _
        %s410 = smul.u32 2, %s25
        %p411 = scmp.lt.s32.totalorder %s410, 3
        %s412 = scalar_select %p411, %s410, 3
        %s413 = smul.addr %s412, 8
        %s414 = scalar_lea.vmem %s0, %s413
        %p415 = pneg %p46
        %p416 = pneg %p43
        %s417 = smul.u32 2, %s25
        %p418 = scmp.lt.s32.totalorder %s417, 3
        %s419 = scalar_select %p418, %s417, 3
        %s420 = smul.addr %s419, 8
        %s421 = scalar_lea.vmem %s1, %s420
        %p422 = pneg %p72
        %p423 = pneg %p69
        %p424 = pneg %p93
        %p425 = pneg %p90
        %p426 = pneg %p114
        %p427 = pneg %p111
        %p428 = pneg %p135
        %p429 = pneg %p132
        %p430 = pneg %p156
        %p431 = pneg %p153
        %p432 = pneg %p177
        %p433 = pneg %p174
        %p434 = pneg %p198
        %p435 = pneg %p195
        %p436 = pneg %p219
        %p437 = pneg %p216
        %p438 = pneg %p240
        %p439 = pneg %p237
        %p440 = pneg %p261
        %p441 = pneg %p258
        %p442 = pneg %p282
        %p443 = pneg %p279
        %p444 = pneg %p308
        %p445 = pneg %p305
        %s446 = smul.u32 2, %s25
        %p447 = scmp.lt.s32.totalorder %s446, 3
        %s448 = scalar_select %p447, %s446, 3
        %s449 = smul.addr %s448, 8
        %s450 = scalar_lea.vmem %s12, %s449
        %s451 = smul.u32 2, %s25
        %p452 = scmp.lt.s32.totalorder %s451, 3
        %s453 = scalar_select %p452, %s451, 3
        %s454 = smul.addr %s453, 8
        %s455 = scalar_lea.vmem %s0, %s454
        %s456 = smul.u32 2, %s25
        %s457 = smul.u32 2, %s25
        %p458 = scmp.lt.s32.totalorder %s457, 3
        %s459 = scalar_select %p458, %s457, 3
        %s460 = smul.addr %s459, 8
        %s461 = scalar_lea.vmem %s1, %s460
        %s462 = smul.u32 2, %s25
        %s463 = smul.u32 2, %s25
        %p464 = scmp.lt.s32.totalorder %s463, 3
        %s465 = scalar_select %p464, %s463, 3
        %s466 = smul.addr %s465, 8
        %s467 = scalar_lea.vmem %s12, %s466
        %s468 = smul.u32 2, %s25
        %v470 = vld [vmem:[%s455] sm:$0xff]
        %v471 = vld [vmem:[%s455 + $0x8] sm:$0xff]
        %v472 = vpack.c.bf16 %v471, %v470
        %v473 = vld [vmem:[%s2] sm:$0xf]
        %v474 = vld [vmem:[%s2 + $0x4] sm:$0xf]
        %v475 = vld [vmem:[%s3] sm:$0x1]
        %v477 = vlaneseq
        %v478 = vshrl.u32 %v477, 7
        %v479 = vsub.s32 0, %v478
        %v480 = vrot.slane %v475, %v479
        %v484 = vunpack.c.l.b16 %v473
        %v485 = vunpack.c.l.b16 %v474
        %v486 = vpack.c.b16 %v485, %v484
        %vm488 = vcmask 130048
        %v490 = vsel %vm488, %v472, 0
        %492 = vmatprep.subr.bf16.mxu0 0
        %493 = vmatpush1.bf16.msra.mxu0 0
        %494 = vmatprep.subr.bf16.mxu0 0
        %495 = vmatpush1.bf16.msra.mxu0 0
        %496 = vmatprep.subr.bf16.mxu0 0
        %497 = vmatpush1.bf16.msra.mxu0 0
        %498 = vmatprep.subr.bf16.mxu0 0
        %499 = vmatpush1.bf16.msra.mxu0 0
        %500 = vmatprep.subr.bf16.mxu0 0
        %501 = vmatpush1.bf16.msra.mxu0 0
        %502 = vmatprep.subr.bf16.mxu0 0
        %503 = vmatpush1.bf16.msra.mxu0 0
        %504 = vmatprep.subr.bf16.mxu0 0
        %505 = vmatpush1.bf16.msra.mxu0 0
        %506 = vmatprep.subr.bf16.mxu0 0
        %507 = vmatpush1.bf16.msra.mxu0 %v486
        %508 = vmatprep.subr.bf16.mxu0 0
        %509 = vmatpush2.bf16.msra.mxu0 0
        %510 = vmatprep.subr.bf16.mxu0 0
        %511 = vmatpush2.bf16.msra.mxu0 0
        %512 = vmatprep.subr.bf16.mxu0 0
        %513 = vmatpush2.bf16.msra.mxu0 0
        %514 = vmatprep.subr.bf16.mxu0 0
        %515 = vmatpush2.bf16.msra.mxu0 0
        %516 = vmatprep.subr.bf16.mxu0 0
        %517 = vmatpush2.bf16.msra.mxu0 0
        %518 = vmatprep.subr.bf16.mxu0 0
        %519 = vmatpush2.bf16.msra.mxu0 0
        %520 = vmatprep.subr.bf16.mxu0 0
        %521 = vmatpush2.bf16.msra.mxu0 0
        %522 = vmatprep.subr.bf16.mxu0 0
        %523 = vmatpush2.bf16.msra.mxu0 0
        %524 = vmatprep.mubr.bf16.mxu0 0
        %525 = vmatmul.mubr.bf16.gmra.mxu0 %v490
        %v526 = vpop.f32.mrf.mxu0
        %v527 = vadd.f32 %v480, %v526
        %v528 = vpop.f32.mrf.mxu0
        %v529 = vpop.f32.mrf.mxu0
        %v530 = vadd.f32 %v480, %v529
        %v531 = vpop.f32.mrf.mxu0
        %532 = vdwg.mxu0
        %v533 = vmax.f32 %v527, 0.0
        %v534 = vmax.f32 %v530, 0.0
        %v535 = vpack.c.bf16 %v534, %v533
        %v536 = vld [vmem:[%s4] sm:$0xff]
        %v537 = vld [vmem:[%s4 + $0x8] sm:$0xff]
        %v538 = vld [vmem:[%s4 + $0x10] sm:$0xff]
        %v539 = vld [vmem:[%s4 + $0x18] sm:$0xff]
        %v540 = vld [vmem:[%s4 + $0x20] sm:$0xff]
        %v541 = vld [vmem:[%s4 + $0x28] sm:$0xff]
        %v542 = vld [vmem:[%s4 + $0x30] sm:$0xff]
        %v543 = vld [vmem:[%s4 + $0x38] sm:$0xff]
        %v544 = vld [vmem:[%s4 + $0x40] sm:$0xff]
        %v545 = vld [vmem:[%s4 + $0x48] sm:$0xff]
        %v546 = vld [vmem:[%s4 + $0x50] sm:$0xff]
        %v547 = vld [vmem:[%s4 + $0x58] sm:$0xff]
        %v548 = vld [vmem:[%s4 + $0x60] sm:$0xff]
        %v549 = vld [vmem:[%s4 + $0x68] sm:$0xff]
        %v550 = vld [vmem:[%s4 + $0x70] sm:$0xff]
        %v551 = vld [vmem:[%s4 + $0x78] sm:$0xff]
        %v552 = vld [vmem:[%s5] sm:$0x3]
        %v554 = vlaneseq
        %v555 = vshrl.u32 %v554, 7
        %v556 = vsub.s32 0, %v555
        %v557 = vrot.slane %v552, %v556
        %v558 = vlaneseq
        %v559 = vshrl.u32 %v558, 7
        %v560 = vsub.s32 1, %v559
        %v561 = vrot.slane %v552, %v560
        %v580 = vunpack.c.l.b16 %v536
        %v581 = vunpack.c.h.b16 %v536
        %v582 = vunpack.c.l.b16 %v537
        %v583 = vunpack.c.h.b16 %v537
        %v584 = vunpack.c.l.b16 %v538
        %v585 = vunpack.c.h.b16 %v538
        %v586 = vunpack.c.l.b16 %v539
        %v587 = vunpack.c.h.b16 %v539
        %v588 = vunpack.c.l.b16 %v540
        %v589 = vunpack.c.h.b16 %v540
        %v590 = vunpack.c.l.b16 %v541
        %v591 = vunpack.c.h.b16 %v541
        %v592 = vunpack.c.l.b16 %v542
        %v593 = vunpack.c.h.b16 %v542
        %v594 = vunpack.c.l.b16 %v543
        %v595 = vunpack.c.h.b16 %v543
        %v596 = vunpack.c.l.b16 %v544
        %v597 = vunpack.c.h.b16 %v544
        %v598 = vunpack.c.l.b16 %v545
        %v599 = vunpack.c.h.b16 %v545
        %v600 = vunpack.c.l.b16 %v546
        %v601 = vunpack.c.h.b16 %v546
        %v602 = vunpack.c.l.b16 %v547
        %v603 = vunpack.c.h.b16 %v547
        %v604 = vunpack.c.l.b16 %v548
        %v605 = vunpack.c.h.b16 %v548
        %v606 = vunpack.c.l.b16 %v549
        %v607 = vunpack.c.h.b16 %v549
        %v608 = vunpack.c.l.b16 %v550
        %v609 = vunpack.c.h.b16 %v550
        %v610 = vunpack.c.l.b16 %v551
        %v611 = vunpack.c.h.b16 %v551
        %v612 = vpack.c.b16 %v582, %v580
        %v613 = vpack.c.b16 %v583, %v581
        %v614 = vpack.c.b16 %v586, %v584
        %v615 = vpack.c.b16 %v587, %v585
        %v616 = vpack.c.b16 %v590, %v588
        %v617 = vpack.c.b16 %v591, %v589
        %v618 = vpack.c.b16 %v594, %v592
        %v619 = vpack.c.b16 %v595, %v593
        %v620 = vpack.c.b16 %v598, %v596
        %v621 = vpack.c.b16 %v599, %v597
        %v622 = vpack.c.b16 %v602, %v600
        %v623 = vpack.c.b16 %v603, %v601
        %v624 = vpack.c.b16 %v606, %v604
        %v625 = vpack.c.b16 %v607, %v605
        %v626 = vpack.c.b16 %v610, %v608
        %v627 = vpack.c.b16 %v611, %v609
        %644 = vmatprep.subr.bf16.mxu0 %v627
        %645 = vmatpush1.bf16.msra.mxu0 %v626
        %646 = vmatprep.subr.bf16.mxu0 %v625
        %647 = vmatpush1.bf16.msra.mxu0 %v624
        %648 = vmatprep.subr.bf16.mxu0 %v623
        %649 = vmatpush1.bf16.msra.mxu0 %v622
        %650 = vmatprep.subr.bf16.mxu0 %v621
        %651 = vmatpush1.bf16.msra.mxu0 %v620
        %652 = vmatprep.subr.bf16.mxu0 %v619
        %653 = vmatpush1.bf16.msra.mxu0 %v618
        %654 = vmatprep.subr.bf16.mxu0 %v617
        %655 = vmatpush1.bf16.msra.mxu0 %v616
        %656 = vmatprep.subr.bf16.mxu0 %v615
        %657 = vmatpush1.bf16.msra.mxu0 %v614
        %658 = vmatprep.subr.bf16.mxu0 %v613
        %659 = vmatpush1.bf16.msra.mxu0 %v612
        %660 = vmatprep.subr.bf16.mxu0 0
        %661 = vmatpush2.bf16.msra.mxu0 0
        %662 = vmatprep.subr.bf16.mxu0 0
        %663 = vmatpush2.bf16.msra.mxu0 0
        %664 = vmatprep.subr.bf16.mxu0 0
        %665 = vmatpush2.bf16.msra.mxu0 0
        %666 = vmatprep.subr.bf16.mxu0 0
        %667 = vmatpush2.bf16.msra.mxu0 0
        %668 = vmatprep.subr.bf16.mxu0 0
        %669 = vmatpush2.bf16.msra.mxu0 0
        %670 = vmatprep.subr.bf16.mxu0 0
        %671 = vmatpush2.bf16.msra.mxu0 0
        %672 = vmatprep.subr.bf16.mxu0 0
        %673 = vmatpush2.bf16.msra.mxu0 0
        %674 = vmatprep.subr.bf16.mxu0 0
        %675 = vmatpush2.bf16.msra.mxu0 0
        %676 = vmatprep.mubr.bf16.mxu0 0
        %677 = vmatmul.mubr.bf16.gmra.mxu0 %v535
        %v678 = vpop.f32.mrf.mxu0
        %v679 = vadd.f32 %v557, %v678
        %v680 = vpop.f32.mrf.mxu0
        %v681 = vadd.f32 %v561, %v680
        %v682 = vpop.f32.mrf.mxu0
        %v683 = vadd.f32 %v557, %v682
        %v684 = vpop.f32.mrf.mxu0
        %v685 = vadd.f32 %v561, %v684
        %686 = vdwg.mxu0
        %v687 = vmax.f32 %v679, 0.0
        %v688 = vmax.f32 %v681, 0.0
        %v689 = vmax.f32 %v683, 0.0
        %v690 = vmax.f32 %v685, 0.0
        %v691 = vpack.c.bf16 %v689, %v687
        %v692 = vpack.c.bf16 %v690, %v688
        %v693 = vld [vmem:[#allocation2] sm:$0xf]
        %v694 = vld [vmem:[#allocation2 + $0x4] sm:$0xf]
        %v695 = vld [vmem:[#allocation2 + $0x8] sm:$0xf]
        %v696 = vld [vmem:[#allocation2 + $0xc] sm:$0xf]
        %v697 = vld [vmem:[#allocation2 + $0x10] sm:$0xf]
        %v698 = vld [vmem:[#allocation2 + $0x14] sm:$0xf]
        %v699 = vld [vmem:[#allocation2 + $0x18] sm:$0xf]
        %v700 = vld [vmem:[#allocation2 + $0x1c] sm:$0xf]
        %v701 = vld [vmem:[#allocation2 + $0x20] sm:$0xf]
        %v702 = vld [vmem:[#allocation2 + $0x24] sm:$0xf]
        %v703 = vld [vmem:[#allocation2 + $0x28] sm:$0xf]
        %v704 = vld [vmem:[#allocation2 + $0x2c] sm:$0xf]
        %v705 = vld [vmem:[#allocation2 + $0x30] sm:$0xf]
        %v706 = vld [vmem:[#allocation2 + $0x34] sm:$0xf]
        %v707 = vld [vmem:[#allocation2 + $0x38] sm:$0xf]
        %v708 = vld [vmem:[#allocation2 + $0x3c] sm:$0xf]
        %v709 = vld [vmem:[#allocation2 + $0x40] sm:$0xf]
        %v710 = vld [vmem:[#allocation2 + $0x44] sm:$0xf]
        %v711 = vld [vmem:[#allocation2 + $0x48] sm:$0xf]
        %v712 = vld [vmem:[#allocation2 + $0x4c] sm:$0xf]
        %v713 = vld [vmem:[#allocation2 + $0x50] sm:$0xf]
        %v714 = vld [vmem:[#allocation2 + $0x54] sm:$0xf]
        %v715 = vld [vmem:[#allocation2 + $0x58] sm:$0xf]
        %v716 = vld [vmem:[#allocation2 + $0x5c] sm:$0xf]
        %v717 = vld [vmem:[#allocation2 + $0x60] sm:$0xf]
        %v718 = vld [vmem:[#allocation2 + $0x64] sm:$0xf]
        %v719 = vld [vmem:[#allocation2 + $0x68] sm:$0xf]
        %v720 = vld [vmem:[#allocation2 + $0x6c] sm:$0xf]
        %v721 = vld [vmem:[#allocation2 + $0x70] sm:$0xf]
        %v722 = vld [vmem:[#allocation2 + $0x74] sm:$0xf]
        %v723 = vld [vmem:[#allocation2 + $0x78] sm:$0xf]
        %v724 = vld [vmem:[#allocation2 + $0x7c] sm:$0xf]
        %v725 = vld [vmem:[%s7] sm:$0x1]
        %v727 = vlaneseq
        %v728 = vshrl.u32 %v727, 7
        %v729 = vsub.s32 0, %v728
        %v730 = vrot.slane %v725, %v729
        %v764 = vunpack.c.l.b16 %v693
        %v765 = vunpack.c.l.b16 %v694
        %v766 = vunpack.c.l.b16 %v695
        %v767 = vunpack.c.l.b16 %v696
        %v768 = vunpack.c.l.b16 %v697
        %v769 = vunpack.c.l.b16 %v698
        %v770 = vunpack.c.l.b16 %v699
        %v771 = vunpack.c.l.b16 %v700
        %v772 = vunpack.c.l.b16 %v701
        %v773 = vunpack.c.l.b16 %v702
        %v774 = vunpack.c.l.b16 %v703
        %v775 = vunpack.c.l.b16 %v704
        %v776 = vunpack.c.l.b16 %v705
        %v777 = vunpack.c.l.b16 %v706
        %v778 = vunpack.c.l.b16 %v707
        %v779 = vunpack.c.l.b16 %v708
        %v780 = vunpack.c.l.b16 %v709
        %v781 = vunpack.c.l.b16 %v710
        %v782 = vunpack.c.l.b16 %v711
        %v783 = vunpack.c.l.b16 %v712
        %v784 = vunpack.c.l.b16 %v713
        %v785 = vunpack.c.l.b16 %v714
        %v786 = vunpack.c.l.b16 %v715
        %v787 = vunpack.c.l.b16 %v716
        %v788 = vunpack.c.l.b16 %v717
        %v789 = vunpack.c.l.b16 %v718
        %v790 = vunpack.c.l.b16 %v719
        %v791 = vunpack.c.l.b16 %v720
        %v792 = vunpack.c.l.b16 %v721
        %v793 = vunpack.c.l.b16 %v722
        %v794 = vunpack.c.l.b16 %v723
        %v795 = vunpack.c.l.b16 %v724
        %v796 = vpack.c.b16 %v765, %v764
        %v797 = vpack.c.b16 %v767, %v766
        %v798 = vpack.c.b16 %v769, %v768
        %v799 = vpack.c.b16 %v771, %v770
        %v800 = vpack.c.b16 %v773, %v772
        %v801 = vpack.c.b16 %v775, %v774
        %v802 = vpack.c.b16 %v777, %v776
        %v803 = vpack.c.b16 %v779, %v778
        %v804 = vpack.c.b16 %v781, %v780
        %v805 = vpack.c.b16 %v783, %v782
        %v806 = vpack.c.b16 %v785, %v784
        %v807 = vpack.c.b16 %v787, %v786
        %v808 = vpack.c.b16 %v789, %v788
        %v809 = vpack.c.b16 %v791, %v790
        %v810 = vpack.c.b16 %v793, %v792
        %v811 = vpack.c.b16 %v795, %v794
        %828 = vmatprep.subr.bf16.mxu0 0
        %829 = vmatpush1.bf16.msra.mxu0 %v803
        %830 = vmatprep.subr.bf16.mxu0 0
        %831 = vmatpush1.bf16.msra.mxu0 %v802
        %832 = vmatprep.subr.bf16.mxu0 0
        %833 = vmatpush1.bf16.msra.mxu0 %v801
        %834 = vmatprep.subr.bf16.mxu0 0
        %835 = vmatpush1.bf16.msra.mxu0 %v800
        %836 = vmatprep.subr.bf16.mxu0 0
        %837 = vmatpush1.bf16.msra.mxu0 %v799
        %838 = vmatprep.subr.bf16.mxu0 0
        %839 = vmatpush1.bf16.msra.mxu0 %v798
        %840 = vmatprep.subr.bf16.mxu0 0
        %841 = vmatpush1.bf16.msra.mxu0 %v797
        %842 = vmatprep.subr.bf16.mxu0 0
        %843 = vmatpush1.bf16.msra.mxu0 %v796
        %844 = vmatprep.subr.bf16.mxu0 0
        %845 = vmatpush2.bf16.msra.mxu0 %v811
        %846 = vmatprep.subr.bf16.mxu0 0
        %847 = vmatpush2.bf16.msra.mxu0 %v810
        %848 = vmatprep.subr.bf16.mxu0 0
        %849 = vmatpush2.bf16.msra.mxu0 %v809
        %850 = vmatprep.subr.bf16.mxu0 0
        %851 = vmatpush2.bf16.msra.mxu0 %v808
        %852 = vmatprep.subr.bf16.mxu0 0
        %853 = vmatpush2.bf16.msra.mxu0 %v807
        %854 = vmatprep.subr.bf16.mxu0 0
        %855 = vmatpush2.bf16.msra.mxu0 %v806
        %856 = vmatprep.subr.bf16.mxu0 0
        %857 = vmatpush2.bf16.msra.mxu0 %v805
        %858 = vmatprep.subr.bf16.mxu0 0
        %859 = vmatpush2.bf16.msra.mxu0 %v804
        %860 = vmatprep.mubr.bf16.mxu0 %v692
        %861 = vmatmul.mubr.bf16.gmra.mxu0 %v691
        %v862 = vpop.f32.mrf.mxu0
        %v863 = vadd.f32 %v730, %v862
        %v864 = vpop.f32.mrf.mxu0
        %v865 = vpop.f32.mrf.mxu0
        %v866 = vadd.f32 %v730, %v865
        %v867 = vpop.f32.mrf.mxu0
        %868 = vdwg.mxu0
        %v869 = vmax.f32 %v863, 0.0
        %v870 = vmax.f32 %v866, 0.0
        %v871 = vpack.c.bf16 %v870, %v869
        %v872 = vld [vmem:[#allocation4] sm:$0xf]
        %v873 = vld [vmem:[#allocation4 + $0x4] sm:$0xf]
        %v874 = vld [vmem:[#allocation4 + $0x8] sm:$0xf]
        %v875 = vld [vmem:[#allocation4 + $0xc] sm:$0xf]
        %v876 = vld [vmem:[#allocation4 + $0x10] sm:$0xf]
        %v877 = vld [vmem:[#allocation4 + $0x14] sm:$0xf]
        %v878 = vld [vmem:[#allocation4 + $0x18] sm:$0xf]
        %v879 = vld [vmem:[#allocation4 + $0x1c] sm:$0xf]
        %v880 = vld [vmem:[#allocation4 + $0x20] sm:$0xf]
        %v881 = vld [vmem:[#allocation4 + $0x24] sm:$0xf]
        %v882 = vld [vmem:[#allocation4 + $0x28] sm:$0xf]
        %v883 = vld [vmem:[#allocation4 + $0x2c] sm:$0xf]
        %v884 = vld [vmem:[#allocation4 + $0x30] sm:$0xf]
        %v885 = vld [vmem:[#allocation4 + $0x34] sm:$0xf]
        %v886 = vld [vmem:[#allocation4 + $0x38] sm:$0xf]
        %v887 = vld [vmem:[#allocation4 + $0x3c] sm:$0xf]
        %v888 = vld [vmem:[%s9] sm:$0x1]
        %v890 = vlaneseq
        %v891 = vshrl.u32 %v890, 7
        %v892 = vsub.s32 0, %v891
        %v893 = vrot.slane %v888, %v892
        %v911 = vunpack.c.l.b16 %v872
        %v912 = vunpack.c.l.b16 %v873
        %v913 = vunpack.c.l.b16 %v874
        %v914 = vunpack.c.l.b16 %v875
        %v915 = vunpack.c.l.b16 %v876
        %v916 = vunpack.c.l.b16 %v877
        %v917 = vunpack.c.l.b16 %v878
        %v918 = vunpack.c.l.b16 %v879
        %v919 = vunpack.c.l.b16 %v880
        %v920 = vunpack.c.l.b16 %v881
        %v921 = vunpack.c.l.b16 %v882
        %v922 = vunpack.c.l.b16 %v883
        %v923 = vunpack.c.l.b16 %v884
        %v924 = vunpack.c.l.b16 %v885
        %v925 = vunpack.c.l.b16 %v886
        %v926 = vunpack.c.l.b16 %v887
        %v927 = vpack.c.b16 %v912, %v911
        %v928 = vpack.c.b16 %v914, %v913
        %v929 = vpack.c.b16 %v916, %v915
        %v930 = vpack.c.b16 %v918, %v917
        %v931 = vpack.c.b16 %v920, %v919
        %v932 = vpack.c.b16 %v922, %v921
        %v933 = vpack.c.b16 %v924, %v923
        %v934 = vpack.c.b16 %v926, %v925
        %943 = vmatprep.subr.bf16.mxu0 0
        %944 = vmatpush1.bf16.msra.mxu0 %v934
        %945 = vmatprep.subr.bf16.mxu0 0
        %946 = vmatpush1.bf16.msra.mxu0 %v933
        %947 = vmatprep.subr.bf16.mxu0 0
        %948 = vmatpush1.bf16.msra.mxu0 %v932
        %949 = vmatprep.subr.bf16.mxu0 0
        %950 = vmatpush1.bf16.msra.mxu0 %v931
        %951 = vmatprep.subr.bf16.mxu0 0
        %952 = vmatpush1.bf16.msra.mxu0 %v930
        %953 = vmatprep.subr.bf16.mxu0 0
        %954 = vmatpush1.bf16.msra.mxu0 %v929
        %955 = vmatprep.subr.bf16.mxu0 0
        %956 = vmatpush1.bf16.msra.mxu0 %v928
        %957 = vmatprep.subr.bf16.mxu0 0
        %958 = vmatpush1.bf16.msra.mxu0 %v927
        %959 = vmatprep.subr.bf16.mxu0 0
        %960 = vmatpush2.bf16.msra.mxu0 0
        %961 = vmatprep.subr.bf16.mxu0 0
        %962 = vmatpush2.bf16.msra.mxu0 0
        %963 = vmatprep.subr.bf16.mxu0 0
        %964 = vmatpush2.bf16.msra.mxu0 0
        %965 = vmatprep.subr.bf16.mxu0 0
        %966 = vmatpush2.bf16.msra.mxu0 0
        %967 = vmatprep.subr.bf16.mxu0 0
        %968 = vmatpush2.bf16.msra.mxu0 0
        %969 = vmatprep.subr.bf16.mxu0 0
        %970 = vmatpush2.bf16.msra.mxu0 0
        %971 = vmatprep.subr.bf16.mxu0 0
        %972 = vmatpush2.bf16.msra.mxu0 0
        %973 = vmatprep.subr.bf16.mxu0 0
        %974 = vmatpush2.bf16.msra.mxu0 0
        %975 = vmatprep.mubr.bf16.mxu0 0
        %976 = vmatmul.mubr.bf16.gmra.mxu0 %v871
        %v977 = vpop.f32.mrf.mxu0
        %v978 = vadd.f32 %v893, %v977
        %v979 = vpop.f32.mrf.mxu0
        %v980 = vpop.f32.mrf.mxu0
        %v981 = vadd.f32 %v893, %v980
        %v982 = vpop.f32.mrf.mxu0
        %983 = vdwg.mxu0
        %v984 = vld [vmem:[%s461] sm:$0xff]
        %v985 = vld [vmem:[%s461 + $0x8] sm:$0xff]
        %v986 = vpack.c.bf16 %v985, %v984
        %v987 = vld [vmem:[%s10] sm:$0xf]
        %vm988 = vcmask 64512
        %v990 = vsel %vm988, %v986, 0
        %vm992 = vcmask 1043456
        %v994 = vsel %vm992, %v987, 0
        %996 = vmatprep.subr.bf16.mxu0 0
        %997 = vmatpush1.bf16.msra.mxu0 0
        %998 = vmatprep.subr.bf16.mxu0 0
        %999 = vmatpush1.bf16.msra.mxu0 0
        %1000 = vmatprep.subr.bf16.mxu0 0
        %1001 = vmatpush1.bf16.msra.mxu0 0
        %1002 = vmatprep.subr.bf16.mxu0 0
        %1003 = vmatpush1.bf16.msra.mxu0 0
        %1004 = vmatprep.subr.bf16.mxu0 0
        %1005 = vmatpush1.bf16.msra.mxu0 0
        %1006 = vmatprep.subr.bf16.mxu0 0
        %1007 = vmatpush1.bf16.msra.mxu0 0
        %1008 = vmatprep.subr.bf16.mxu0 0
        %1009 = vmatpush1.bf16.msra.mxu0 0
        %1010 = vmatprep.subr.bf16.mxu0 0
        %1011 = vmatpush1.bf16.msra.mxu0 %v994
        %1012 = vmatprep.subr.bf16.mxu0 0
        %1013 = vmatpush2.bf16.msra.mxu0 0
        %1014 = vmatprep.subr.bf16.mxu0 0
        %1015 = vmatpush2.bf16.msra.mxu0 0
        %1016 = vmatprep.subr.bf16.mxu0 0
        %1017 = vmatpush2.bf16.msra.mxu0 0
        %1018 = vmatprep.subr.bf16.mxu0 0
        %1019 = vmatpush2.bf16.msra.mxu0 0
        %1020 = vmatprep.subr.bf16.mxu0 0
        %1021 = vmatpush2.bf16.msra.mxu0 0
        %1022 = vmatprep.subr.bf16.mxu0 0
        %1023 = vmatpush2.bf16.msra.mxu0 0
        %1024 = vmatprep.subr.bf16.mxu0 0
        %1025 = vmatpush2.bf16.msra.mxu0 0
        %1026 = vmatprep.subr.bf16.mxu0 0
        %1027 = vmatpush2.bf16.msra.mxu0 0
        %1028 = vmatprep.mubr.bf16.mxu0 0
        %1029 = vmatmul.mubr.bf16.gmra.mxu0 %v990
        %v1030 = vpop.f32.mrf.mxu0
        %v1031 = vadd.f32 0.0, %v1030
        %v1032 = vpop.f32.mrf.mxu0
        %v1033 = vpop.f32.mrf.mxu0
        %v1034 = vadd.f32 0.0, %v1033
        %v1035 = vpop.f32.mrf.mxu0
        %1036 = vdwg.mxu0
        %v1037 = vmul.f32 %v978, %v1031
        %v1038 = vmul.f32 %v981, %v1034
        %v1039 = vpack.c.bf16 %v1038, %v1037
        %v1040 = vld [vmem:[%s11] sm:$0xf]
        %v1041 = vld [vmem:[%s11 + $0x4] sm:$0xf]
        %v1042 = vld [vmem:[%s11 + $0x8] sm:$0xf]
        %v1043 = vld [vmem:[%s11 + $0xc] sm:$0xf]
        %v1044 = vld [vmem:[%s11 + $0x10] sm:$0xf]
        %v1045 = vld [vmem:[%s11 + $0x14] sm:$0xf]
        %v1046 = vld [vmem:[%s11 + $0x18] sm:$0xf]
        %v1047 = vld [vmem:[%s11 + $0x1c] sm:$0xf]
        %v1048 = vld [vmem:[%s11 + $0x20] sm:$0xf]
        %v1049 = vld [vmem:[%s11 + $0x24] sm:$0xf]
        %v1050 = vld [vmem:[%s11 + $0x28] sm:$0xf]
        %v1051 = vld [vmem:[%s11 + $0x2c] sm:$0xf]
        %v1052 = vld [vmem:[%s11 + $0x30] sm:$0xf]
        %v1053 = vld [vmem:[%s11 + $0x34] sm:$0xf]
        %v1054 = vld [vmem:[%s11 + $0x38] sm:$0xf]
        %v1055 = vld [vmem:[%s11 + $0x3c] sm:$0xf]
        %v1072 = vunpack.c.l.b16 %v1040
        %v1073 = vunpack.c.l.b16 %v1041
        %v1074 = vunpack.c.l.b16 %v1042
        %v1075 = vunpack.c.l.b16 %v1043
        %v1076 = vunpack.c.l.b16 %v1044
        %v1077 = vunpack.c.l.b16 %v1045
        %v1078 = vunpack.c.l.b16 %v1046
        %v1079 = vunpack.c.l.b16 %v1047
        %v1080 = vunpack.c.l.b16 %v1048
        %v1081 = vunpack.c.l.b16 %v1049
        %v1082 = vunpack.c.l.b16 %v1050
        %v1083 = vunpack.c.l.b16 %v1051
        %v1084 = vunpack.c.l.b16 %v1052
        %v1085 = vunpack.c.l.b16 %v1053
        %v1086 = vunpack.c.l.b16 %v1054
        %v1087 = vunpack.c.l.b16 %v1055
        %v1088 = vpack.c.b16 %v1073, %v1072
        %v1089 = vpack.c.b16 %v1075, %v1074
        %v1090 = vpack.c.b16 %v1077, %v1076
        %v1091 = vpack.c.b16 %v1079, %v1078
        %v1092 = vpack.c.b16 %v1081, %v1080
        %v1093 = vpack.c.b16 %v1083, %v1082
        %v1094 = vpack.c.b16 %v1085, %v1084
        %v1095 = vpack.c.b16 %v1087, %v1086
        %1104 = vmatprep.subr.bf16.mxu0 0
        %1105 = vmatpush1.bf16.msra.mxu0 %v1095
        %1106 = vmatprep.subr.bf16.mxu0 0
        %1107 = vmatpush1.bf16.msra.mxu0 %v1094
        %1108 = vmatprep.subr.bf16.mxu0 0
        %1109 = vmatpush1.bf16.msra.mxu0 %v1093
        %1110 = vmatprep.subr.bf16.mxu0 0
        %1111 = vmatpush1.bf16.msra.mxu0 %v1092
        %1112 = vmatprep.subr.bf16.mxu0 0
        %1113 = vmatpush1.bf16.msra.mxu0 %v1091
        %1114 = vmatprep.subr.bf16.mxu0 0
        %1115 = vmatpush1.bf16.msra.mxu0 %v1090
        %1116 = vmatprep.subr.bf16.mxu0 0
        %1117 = vmatpush1.bf16.msra.mxu0 %v1089
        %1118 = vmatprep.subr.bf16.mxu0 0
        %1119 = vmatpush1.bf16.msra.mxu0 %v1088
        %1120 = vmatprep.subr.bf16.mxu0 0
        %1121 = vmatpush2.bf16.msra.mxu0 0
        %1122 = vmatprep.subr.bf16.mxu0 0
        %1123 = vmatpush2.bf16.msra.mxu0 0
        %1124 = vmatprep.subr.bf16.mxu0 0
        %1125 = vmatpush2.bf16.msra.mxu0 0
        %1126 = vmatprep.subr.bf16.mxu0 0
        %1127 = vmatpush2.bf16.msra.mxu0 0
        %1128 = vmatprep.subr.bf16.mxu0 0
        %1129 = vmatpush2.bf16.msra.mxu0 0
        %1130 = vmatprep.subr.bf16.mxu0 0
        %1131 = vmatpush2.bf16.msra.mxu0 0
        %1132 = vmatprep.subr.bf16.mxu0 0
        %1133 = vmatpush2.bf16.msra.mxu0 0
        %1134 = vmatprep.subr.bf16.mxu0 0
        %1135 = vmatpush2.bf16.msra.mxu0 0
        %1136 = vmatprep.mubr.bf16.mxu0 0
        %1137 = vmatmul.mubr.bf16.gmra.mxu0 %v1039
        %v1138 = vpop.f32.mrf.mxu0
        %v1139 = vadd.f32 0.0, %v1138
        %v1140 = vpop.f32.mrf.mxu0
        %v1141 = vpop.f32.mrf.mxu0
        %v1142 = vadd.f32 0.0, %v1141
        %v1143 = vpop.f32.mrf.mxu0
        %1144 = vdwg.mxu0
        %1145 = vst.msk [vmem:[%s467] sm:$0xff] %vm488, %v1139
        %1146 = vst.msk [vmem:[%s467 + $0x8] sm:$0xff] %vm488, %v1142
        %s1147 = smul.u32 2, %s25
        %p1148 = scmp.lt.s32.totalorder %s1147, 3
        %s1149 = scalar_select %p1148, %s1147, 3
        %s1150 = smul.addr %s1149, 8
        %s1151 = scalar_lea.vmem %s12, %s1150
        // Predicated region
        $region77: #{tpu_custom_call.1} parent=67 // pred_check
          %p1152 = pneg %p305
        $region78: #{tpu_custom_call.1} parent=67 // pred_check_branch
          %1154 = sbr.rel (%p1152) target = $region80
        $region79: #{tpu_custom_call.1} parent=67 // pred_region
          %s1155 = smul.u32 2, %s25
        $region80: #{tpu_custom_call.1} parent=67 // pred_fallthru
          _
      $region68: #{tpu_custom_call.1} parent=5 // pred_fallthru
        _
      %p1156 = scmp.le.s32.totalorder 2, %s20
      // Predicated region
      $region81: #{tpu_custom_call.1} parent=5 // pred_check
        %p1157 = pneg %p1156
      $region82: #{tpu_custom_call.1} parent=5 // pred_check_branch
        %1159 = sbr.rel (%p1157) target = $region84
      $region83: #{tpu_custom_call.1} parent=5 // pred_region
        %s1160 = ssub.s32 %s20, 2
        // Predicated region
        $region85: #{tpu_custom_call.1} parent=83 // pred_check
          %p1161 = pneg %p311
        $region86: #{tpu_custom_call.1} parent=83 // pred_check_branch
          %1163 = sbr.rel (%p1161) target = $region88
        $region87: #{tpu_custom_call.1} parent=83 // pred_region
          %s1164 = smul.u32 2, %s26
          %p1165 = scmp.lt.s32.totalorder %s1164, 3
          %s1166 = scalar_select %p1165, %s1164, 3
          %s1167 = smul.addr %s1166, 8
          %s1168 = scalar_lea.vmem %s12, %s1167
        $region88: #{tpu_custom_call.1} parent=83 // pred_fallthru
          _
      $region84: #{tpu_custom_call.1} parent=5 // pred_fallthru
        _
    $region6: #{tpu_custom_call.1} parent=1 // loop_footer
      %s24 = sadd.s32 1, %s20
    $region7: #{tpu_custom_call.1} parent=1 // loop_footer_branch
      %19 = sbr.rel target = $region3
    $region8: #{tpu_custom_call.1} parent=1 // loop_exit
      _
    %1169 = vsyncpa [#allocation3], 1
    %s1170 = scalar_lea.sflag [#allocation3], 1
    %1171 = vsyncpa %s1170, 1
    %1172 = vsyncpa [#allocation5], 1

</llo_original>
